<compile_context>
chip_gen: v7x
topology: tpu7x:2x2x1
jax: 0.10.0
libtpu: 0.0.40
codegen_flags: <defaults>
</compile_context>

<pallas_src>
import functools

import jax
import jax.numpy as jnp
from jax.experimental import pallas as pl
from jax.experimental.pallas import tpu as pltpu


def _round_up(x: int, m: int) -> int:
    return (x + m - 1) // m * m


def _pad2(a, rows: int, cols: int):
    pr, pc = rows - a.shape[0], cols - a.shape[1]
    if pr == 0 and pc == 0:
        return a
    return jnp.pad(a, ((0, pr), (0, pc)))


def _pick_tile(dim: int, tile_max: int, align: int):
    """Pick a tile size (multiple of `align`, <= tile_max) that minimizes the
    padded extent round_up(round_up(dim, align), tile). Returns (tile, padded)."""
    dim_pad = _round_up(dim, align)
    tile_max = max(tile_max, align)
    if dim_pad <= tile_max:
        return dim_pad, dim_pad                      # single block, zero extra pad
    best_tile, best_total = None, None
    t = (tile_max // align) * align
    while t >= align:
        total = _round_up(dim_pad, t)
        if best_total is None or total < best_total:  # first hit = largest tile w/ min pad
            best_tile, best_total = t, total
        t -= align
    return best_tile, best_total


def _sigmoid(z):
    # Exact sigmoid; safe at extremes (1/(1+inf) == 0 in f32, no NaN).
    return 1.0 / (1.0 + jnp.exp(-z))


def _kernel_single_k(x_ref, w_ref, b_ref, o_ref, *, compute_dtype):
    """Whole contraction in one step: o = sigmoid(x @ w + b). No scratch."""
    x = x_ref[...]
    w = w_ref[...]
    if compute_dtype is not None:
        x = x.astype(compute_dtype)
        w = w.astype(compute_dtype)
    z = jnp.dot(x, w, preferred_element_type=jnp.float32) + b_ref[...]
    o_ref[...] = _sigmoid(z).astype(o_ref.dtype)


def _kernel_multi_k(x_ref, w_ref, b_ref, o_ref, acc_ref, *, compute_dtype):
    """K-tiled contraction with f32 VMEM accumulator (init/finalize via pl.when)."""
    k = pl.program_id(2)

    @pl.when(k == 0)
    def _init():
        acc_ref[...] = jnp.zeros_like(acc_ref)

    x = x_ref[...]
    w = w_ref[...]
    if compute_dtype is not None:
        x = x.astype(compute_dtype)
        w = w.astype(compute_dtype)
    acc_ref[...] += jnp.dot(x, w, preferred_element_type=jnp.float32)

    @pl.when(k == pl.num_programs(2) - 1)
    def _finalize():
        z = acc_ref[...] + b_ref[...]            # (1, TN) broadcasts over (TM, TN)
        o_ref[...] = _sigmoid(z).astype(o_ref.dtype)


class CustomNetPallas:
    """sigmoid(x @ weight.T + bias), matching PyTorch nn.Linear + nn.Sigmoid.

    Weight/bias layout + padding is done ONCE here (not per forward call):
    weight (out, in) -> (K_pad, N_pad) canonical MXU RHS, bias -> (1, N_pad).
    """

    def __init__(self, weight, bias, *, tn_max=512, tk_max=2048, use_bf16=False):
        output_dim, input_dim = weight.shape
        assert bias.shape == (output_dim,)
        self.output_dim = output_dim
        self.input_dim = input_dim
        self.compute_dtype = jnp.bfloat16 if use_bf16 else None

        # Divisor-friendly tiles on the padded dims (lane dim N -> mult of 128,
        # contraction dim K -> mult of 128 because it is x's lane dim).
        self.TN, self.N_pad = _pick_tile(output_dim, tn_max, 128)
        self.TK, self.K_pad = _pick_tile(input_dim, tk_max, 128)
        self.grid_k = self.K_pad // self.TK

        # One-time transpose + zero-pad (zero K-padding contributes 0 to the dot).
        w_kn = jnp.asarray(weight).T                       # (K, N)
        self.w_kn = _pad2(w_kn, self.K_pad, self.N_pad)
        self.b_row = _pad2(jnp.asarray(bias).reshape(1, -1), 1, self.N_pad)

    def __call__(self, x, *, tm_max=512):
        batch, in_dim = x.shape
        assert in_dim == self.input_dim, "input feature mismatch"

        TM, M_pad = _pick_tile(batch, tm_max, 8)
        TN, N_pad = self.TN, self.N_pad
        TK, K_pad, grid_k = self.TK, self.K_pad, self.grid_k

        grid_m = M_pad // TM
        grid_n = N_pad // TN

        # Give both v7x TensorCores work when the parallel grid would be 1x1.
        if grid_m == 1 and grid_n == 1:
            if TM >= 16 and TM % 16 == 0:
                TM //= 2
                grid_m = 2
            elif TN >= 256 and (TN // 128) % 2 == 0:
                TN //= 2
                grid_n = 2

        # Only x is padded per call.
        xp = _pad2(x, M_pad, K_pad)

        cost = pl.CostEstimate(
            flops=2 * M_pad * N_pad * K_pad + 2 * M_pad * N_pad,
            transcendentals=M_pad * N_pad,
            bytes_accessed=4 * (M_pad * K_pad + K_pad * N_pad + N_pad + M_pad * N_pad),
        )

        # Double-buffered footprint estimate -> explicit, v7x-safe VMEM limit.
        need = 4 * (2 * (TM * TK + TK * TN + TN) + 2 * TM * TN
                    + (TM * TN if grid_k > 1 else 0))
        vmem_limit = min(48 * 1024 * 1024, max(2 * need, 16 * 1024 * 1024))

        if grid_k == 1:
            # Fast path: single K step -> no accumulator scratch, direct epilogue.
            out = pl.pallas_call(
                functools.partial(_kernel_single_k, compute_dtype=self.compute_dtype),
                out_shape=jax.ShapeDtypeStruct((M_pad, N_pad), x.dtype),
                grid_spec=pltpu.PrefetchScalarGridSpec(
                    num_scalar_prefetch=0,
                    grid=(grid_m, grid_n),
                    in_specs=[
                        pl.BlockSpec((TM, TK), lambda i, j: (i, 0)),   # x
                        pl.BlockSpec((TK, TN), lambda i, j: (0, j)),   # weight (K, N)
                        pl.BlockSpec((1, TN), lambda i, j: (0, j)),    # bias
                    ],
                    out_specs=pl.BlockSpec((TM, TN), lambda i, j: (i, j)),
                ),
                compiler_params=pltpu.CompilerParams(
                    dimension_semantics=("parallel", "parallel"),
                    vmem_limit_bytes=vmem_limit,
                ),
                cost_estimate=cost,
            )(xp, self.w_kn, self.b_row)
        else:
            out = pl.pallas_call(
                functools.partial(_kernel_multi_k, compute_dtype=self.compute_dtype),
                out_shape=jax.ShapeDtypeStruct((M_pad, N_pad), x.dtype),
                grid_spec=pltpu.PrefetchScalarGridSpec(
                    num_scalar_prefetch=0,
                    grid=(grid_m, grid_n, grid_k),
                    in_specs=[
                        pl.BlockSpec((TM, TK), lambda i, j, k: (i, k)),   # x
                        pl.BlockSpec((TK, TN), lambda i, j, k: (k, j)),   # weight (K, N)
                        pl.BlockSpec((1, TN), lambda i, j, k: (0, j)),    # bias
                    ],
                    out_specs=pl.BlockSpec((TM, TN), lambda i, j, k: (i, j)),
                    scratch_shapes=[pltpu.VMEM((TM, TN), jnp.float32)],
                ),
                compiler_params=pltpu.CompilerParams(
                    dimension_semantics=("parallel", "parallel", "arbitrary"),
                    vmem_limit_bytes=vmem_limit,
                ),
                cost_estimate=cost,
            )(xp, self.w_kn, self.b_row)

        return out[:batch, :self.output_dim]


def _check(net, x, weight, bias, atol=2e-3, rtol=2e-3):
    out = net(x)
    jax.block_until_ready(out)
    ref = jax.nn.sigmoid(x @ weight.T + bias)
    assert out.shape == ref.shape, (out.shape, ref.shape)
    assert jnp.allclose(out, ref, atol=atol, rtol=rtol), (
        float(jnp.max(jnp.abs(out - ref))))


if __name__ == "__main__":
    key = jax.random.PRNGKey(0)
    k1, k2, k3, k4, k5, k6 = jax.random.split(key, 6)

    # Small shapes matching the module: CustomNet(input_dim=32, output_dim=16), batch=8.
    x = jax.random.normal(k1, (8, 32), dtype=jnp.float32)
    w = jax.random.normal(k2, (16, 32), dtype=jnp.float32) * 0.1
    b = jax.random.normal(k3, (16,), dtype=jnp.float32) * 0.1
    net = CustomNetPallas(w, b)
    _check(net, x, w, b)

    # Non-aligned shapes: 2-block M split (both TCs busy), lane-padded N,
    # zero-extra-pad single-step K (TK=1152).
    x2 = jax.random.normal(k4, (160, 1152), dtype=jnp.float32)
    w2 = jax.random.normal(k5, (272, 1152), dtype=jnp.float32) * 0.05
    b2 = jax.random.normal(k6, (272,), dtype=jnp.float32) * 0.1
    net2 = CustomNetPallas(w2, b2)
    _check(net2, x2, w2, b2)

    # Same problem with a capped K tile to exercise the multi-K accumulator
    # path (divisor search picks TK=384 -> 3 K steps, zero padding).
    net3 = CustomNetPallas(w2, b2, tk_max=512)
    _check(net3, x2, w2, b2)

    print("KERNEL_OK")
</pallas_src>

<mosaic_0001>
module attributes {stable_mosaic.version = 11 : i64} {
  func.func @_kernel_single_k(%arg0: i32, %arg1: i32, %arg2: memref<8x128xf32, #tpu.memory_space<vmem>>, %arg3: memref<128x128xf32, #tpu.memory_space<vmem>>, %arg4: memref<1x128xf32, #tpu.memory_space<vmem>>, %arg5: memref<8x128xf32, #tpu.memory_space<vmem>>) attributes {dimension_semantics = [#tpu.dimension_semantics<parallel>, #tpu.dimension_semantics<parallel>], iteration_bounds = array<i64: 1, 1>, scalar_prefetch = 0 : i64, scratch_operands = 0 : i64, tpu.core_type = #tpu.core_type<tc>, window_params = [{transform_indices = @transform_0, window_bounds = array<i64: 8, 128>}, {transform_indices = @transform_1, window_bounds = array<i64: 128, 128>}, {transform_indices = @transform_2, window_bounds = array<i64: 1, 128>}, {transform_indices = @transform_3, window_bounds = array<i64: 8, 128>}]} {
    %c0 = arith.constant 0 : index
    %c0_0 = arith.constant 0 : index
    %0 = vector.load %arg2[%c0, %c0_0] : memref<8x128xf32, #tpu.memory_space<vmem>>, vector<8x128xf32>
    %c0_1 = arith.constant 0 : index
    %c0_2 = arith.constant 0 : index
    %1 = vector.load %arg3[%c0_1, %c0_2] : memref<128x128xf32, #tpu.memory_space<vmem>>, vector<128x128xf32>
    %cst = arith.constant dense<0.000000e+00> : vector<8x128xf32>
    %2 = tpu.matmul %0, %1, %cst {dimension_numbers = #tpu.dot_dimension_numbers<[1], [0], [0], [1], [0, 0, 1, 1], [], []>} : vector<8x128xf32>, vector<128x128xf32>, vector<8x128xf32> -> vector<8x128xf32>
    %c0_3 = arith.constant 0 : index
    %c0_4 = arith.constant 0 : index
    %3 = vector.load %arg4[%c0_3, %c0_4] : memref<1x128xf32, #tpu.memory_space<vmem>>, vector<1x128xf32>
    %4 = vector.broadcast %3 : vector<1x128xf32> to vector<8x128xf32>
    %5 = arith.addf %2, %4 : vector<8x128xf32>
    %cst_5 = arith.constant 0.000000e+00 : f32
    %6 = vector.broadcast %cst_5 : f32 to vector<8x128xf32>
    %7 = arith.subf %6, %5 : vector<8x128xf32>
    %8 = math.exp %7 : vector<8x128xf32>
    %cst_6 = arith.constant 1.000000e+00 : f32
    %9 = vector.broadcast %cst_6 : f32 to vector<8x128xf32>
    %10 = arith.addf %9, %8 : vector<8x128xf32>
    %cst_7 = arith.constant 1.000000e+00 : f32
    %11 = vector.broadcast %cst_7 : f32 to vector<8x128xf32>
    %12 = arith.divf %11, %10 : vector<8x128xf32>
    %c0_8 = arith.constant 0 : index
    %c0_9 = arith.constant 0 : index
    %13 = vector.load %arg5[%c0_8, %c0_9] : memref<8x128xf32, #tpu.memory_space<vmem>>, vector<8x128xf32>
    tpu.vector_store %arg5[%c0_8, %c0_9], %12 {strides = array<i32>} : memref<8x128xf32, #tpu.memory_space<vmem>>, vector<8x128xf32>,
    return
  }
  func.func @transform_0(%arg0: i32, %arg1: i32) -> (i32, i32) {
    %c0_i32 = arith.constant 0 : i32
    %c0_i32_0 = arith.constant 0 : i32
    return %arg0, %c0_i32 : i32, i32
  }
  func.func @transform_1(%arg0: i32, %arg1: i32) -> (i32, i32) {
    %c0_i32 = arith.constant 0 : i32
    %c0_i32_0 = arith.constant 0 : i32
    return %c0_i32, %arg1 : i32, i32
  }
  func.func @transform_2(%arg0: i32, %arg1: i32) -> (i32, i32) {
    %c0_i32 = arith.constant 0 : i32
    %c0_i32_0 = arith.constant 0 : i32
    return %c0_i32, %arg1 : i32, i32
  }
  func.func @transform_3(%arg0: i32, %arg1: i32) -> (i32, i32) {
    %c0_i32 = arith.constant 0 : i32
    return %arg0, %arg1 : i32, i32
  }
}

</mosaic_0001>

<llo_original>
// kernel: tpu_custom_call.1
$region0: #{tpu_custom_call.1}
  #allocation0 [shape = 'u32[]', space=smem, size = 0x4, offset = 0x4, fixed_abs, tag = 'smem constant byte address 0x4 - core index']
  #allocation1 [shape = 'u32[144,128]{1,0:T(1,128)}', space=vmem, size = 0x12000, scoped, tag = 'internal scratch']
  %s0 = inlined_call_operand.hbm [shape: f32[8,128], index: 0, kind: input, shape index: {}]
  %s1 = inlined_call_operand.hbm [shape: f32[128,128], index: 1, kind: input, shape index: {}]
  %s2 = inlined_call_operand.vmem [shape: f32[1,128], index: 2, kind: input, shape index: {}]
  %s3 = inlined_call_operand.hbm [shape: f32[8,128], index: 3, kind: output, shape index: {}]
  %s4 = sld [smem:[#allocation0]]
  $region30: #{tpu_custom_call.1} parent=0
    _
  %s6 = ssub.s32 1, %s4
  %s7 = scalar_select 0, %s6, %s4
  $region1: #{tpu_custom_call.1} parent=0
    #allocation2 [shape = 'u8[4096]{0}', space=vmem, size = 0x1000, scoped, tag = 'input window, operand 0, single buffered']
    #allocation3 [shape = 's32[1]{0}', space=sflag, size = 0x4, scoped, tag = 'scoped memory for tpu_custom_call.1']
    #allocation4 [shape = 's32[1]{0}', space=sflag, size = 0x4, scoped, tag = 'scoped memory for tpu_custom_call.1']
    #allocation5 [shape = 'u8[65536]{0}', space=vmem, size = 0x10000, scoped, tag = 'input window, operand 1, single buffered']
    #allocation6 [shape = 's32[1]{0}', space=sflag, size = 0x4, scoped, tag = 'scoped memory for tpu_custom_call.1']
    #allocation7 [shape = 'u8[4096]{0}', space=vmem, size = 0x1000, scoped, tag = 'output window, operand 0, single buffered']
    %8 = vsyncpa [#allocation3], 0
    %9 = vsyncpa [#allocation6], 0
    %10 = vsyncpa [#allocation4], 0
    // Predicated region
    $region2: #{tpu_custom_call.1} parent=1 // pred_check
      _
    $region3: #{tpu_custom_call.1} parent=1 // pred_check_branch
      %12 = sbr.rel (0) target = $region5
    $region4: #{tpu_custom_call.1} parent=1 // pred_region
      %s14 = ssub.s32 128, 128
      %15 = vsyncadd [#allocation3], %s14
      %s17 = sshll.u32 [#allocation2], 4
      %s18 = int_to_ptr.vmem [resolvable:$true] %s17
      %20 = dma.hbm_to_vmem [thread:$0]  %s0, 128, %s18, [#allocation3]
    $region5: #{tpu_custom_call.1} parent=1 // pred_fallthru
      _
    // Predicated region
    $region6: #{tpu_custom_call.1} parent=1 // pred_check
      _
    $region7: #{tpu_custom_call.1} parent=1 // pred_check_branch
      %22 = sbr.rel (0) target = $region9
    $region8: #{tpu_custom_call.1} parent=1 // pred_region
      %s24 = ssub.s32 2048, 2048
      %25 = vsyncadd [#allocation6], %s24
      %s26 = sshll.u32 [#allocation5], 4
      %s27 = int_to_ptr.vmem [resolvable:$true] %s26
      %32 = dma.hbm_to_vmem [thread:$0]  %s1, 2048, %s27, [#allocation6], 128, 128, 8
    $region9: #{tpu_custom_call.1} parent=1 // pred_fallthru
      _
    // Predicated region
    $region10: #{tpu_custom_call.1} parent=1 // pred_check
      _
    $region11: #{tpu_custom_call.1} parent=1 // pred_check_branch
      %34 = sbr.rel (0) target = $region13
    $region12: #{tpu_custom_call.1} parent=1 // pred_region
      _
    $region13: #{tpu_custom_call.1} parent=1 // pred_fallthru
      _
    // Predicated region
    $region14: #{tpu_custom_call.1} parent=1 // pred_check
      _
    $region15: #{tpu_custom_call.1} parent=1 // pred_check_branch
      %36 = sbr.rel (0) target = $region17
    $region16: #{tpu_custom_call.1} parent=1 // pred_region
      %37 = dma.done [#allocation3], 128
    $region17: #{tpu_custom_call.1} parent=1 // pred_fallthru
      _
    // Predicated region
    $region18: #{tpu_custom_call.1} parent=1 // pred_check
      _
    $region19: #{tpu_custom_call.1} parent=1 // pred_check_branch
      %39 = sbr.rel (0) target = $region21
    $region20: #{tpu_custom_call.1} parent=1 // pred_region
      %40 = dma.done [#allocation6], 2048
    $region21: #{tpu_custom_call.1} parent=1 // pred_fallthru
      _
    %v41 = vld [vmem:[#allocation2] sm:$0xff]
    %v42 = vld [vmem:[#allocation5] sm:$0xff]
    %v43 = vld [vmem:[#allocation5 + $0x8] sm:$0xff]
    %v44 = vld [vmem:[#allocation5 + $0x10] sm:$0xff]
    %v45 = vld [vmem:[#allocation5 + $0x18] sm:$0xff]
    %v46 = vld [vmem:[#allocation5 + $0x20] sm:$0xff]
    %v47 = vld [vmem:[#allocation5 + $0x28] sm:$0xff]
    %v48 = vld [vmem:[#allocation5 + $0x30] sm:$0xff]
    %v49 = vld [vmem:[#allocation5 + $0x38] sm:$0xff]
    %v50 = vld [vmem:[#allocation5 + $0x40] sm:$0xff]
    %v51 = vld [vmem:[#allocation5 + $0x48] sm:$0xff]
    %v52 = vld [vmem:[#allocation5 + $0x50] sm:$0xff]
    %v53 = vld [vmem:[#allocation5 + $0x58] sm:$0xff]
    %v54 = vld [vmem:[#allocation5 + $0x60] sm:$0xff]
    %v55 = vld [vmem:[#allocation5 + $0x68] sm:$0xff]
    %v56 = vld [vmem:[#allocation5 + $0x70] sm:$0xff]
    %v57 = vld [vmem:[#allocation5 + $0x78] sm:$0xff]
    %v58 = vld [vmem:[%s2] sm:$0x1]
    %v60 = vlaneseq
    %v61 = vshrl.u32 %v60, 7
    %v62 = vsub.s32 0, %v61
    %v63 = vrot.slane %v58, %v62
    %65 = vmatprep.subr.mxu0 0.0
    %66 = vmatpush1.msra.mxu0 %v42
    %67 = vmatprep.subr.mxu0 0.0
    %68 = vmatpush1.msra.mxu0 %v43
    %69 = vmatprep.subr.mxu0 0.0
    %70 = vmatpush1.msra.mxu0 %v44
    %71 = vmatprep.subr.mxu0 0.0
    %72 = vmatpush1.msra.mxu0 %v45
    %73 = vmatprep.subr.mxu0 0.0
    %74 = vmatpush1.msra.mxu0 %v46
    %75 = vmatprep.subr.mxu0 0.0
    %76 = vmatpush1.msra.mxu0 %v47
    %77 = vmatprep.subr.mxu0 0.0
    %78 = vmatpush1.msra.mxu0 %v48
    %79 = vmatprep.subr.mxu0 0.0
    %80 = vmatpush1.msra.mxu0 %v49
    %81 = vmatprep.subr.mxu0 0.0
    %82 = vmatpush1.msra.mxu0 %v50
    %83 = vmatprep.subr.mxu0 0.0
    %84 = vmatpush1.msra.mxu0 %v51
    %85 = vmatprep.subr.mxu0 0.0
    %86 = vmatpush1.msra.mxu0 %v52
    %87 = vmatprep.subr.mxu0 0.0
    %88 = vmatpush1.msra.mxu0 %v53
    %89 = vmatprep.subr.mxu0 0.0
    %90 = vmatpush1.msra.mxu0 %v54
    %91 = vmatprep.subr.mxu0 0.0
    %92 = vmatpush1.msra.mxu0 %v55
    %93 = vmatprep.subr.mxu0 0.0
    %94 = vmatpush1.msra.mxu0 %v56
    %95 = vmatprep.subr.mxu0 0.0
    %96 = vmatpush1.msra.mxu0 %v57
    %97 = vmatprep.subr.mxu0 0.0
    %98 = vmatpush1.msra.mxu0 0.0
    %99 = vmatprep.subr.mxu0 0.0
    %100 = vmatpush1.msra.mxu0 0.0
    %101 = vmatprep.subr.mxu0 0.0
    %102 = vmatpush1.msra.mxu0 0.0
    %103 = vmatprep.subr.mxu0 0.0
    %104 = vmatpush1.msra.mxu0 0.0
    %105 = vmatprep.subr.mxu0 0.0
    %106 = vmatpush1.msra.mxu0 0.0
    %107 = vmatprep.subr.mxu0 0.0
    %108 = vmatpush1.msra.mxu0 0.0
    %109 = vmatprep.subr.mxu0 0.0
    %110 = vmatpush1.msra.mxu0 0.0
    %111 = vmatprep.subr.mxu0 0.0
    %112 = vmatpush1.msra.mxu0 0.0
    %113 = vmatprep.subr.mxu0 0.0
    %114 = vmatpush1.msra.mxu0 0.0
    %115 = vmatprep.subr.mxu0 0.0
    %116 = vmatpush1.msra.mxu0 0.0
    %117 = vmatprep.subr.mxu0 0.0
    %118 = vmatpush1.msra.mxu0 0.0
    %119 = vmatprep.subr.mxu0 0.0
    %120 = vmatpush1.msra.mxu0 0.0
    %121 = vmatprep.subr.mxu0 0.0
    %122 = vmatpush1.msra.mxu0 0.0
    %123 = vmatprep.subr.mxu0 0.0
    %124 = vmatpush1.msra.mxu0 0.0
    %125 = vmatprep.subr.mxu0 0.0
    %126 = vmatpush1.msra.mxu0 0.0
    %127 = vmatprep.subr.mxu0 0.0
    %128 = vmatpush1.msra.mxu0 0.0
    %129 = vmatprep.mubr.f32.mxu0 0.0
    %130 = vmatmul.mubr.f32.gmra.mrb[0].mxu0 %v41
    %v131 = vpop.f32.mrb[0].mxu0
    %v132 = vadd.f32 %v63, %v131
    %v133 = vpop.f32.mrb[0].mxu0
    %134 = vdwg.mxu0
    %v135 = vsub.f32 0.0, %v132
    %v136 = vmul.f32 %v135, 1.442695
    %v137 = vpow.pop %v136
    %v138 = vadd.f32 %v137, 1.0
    %v139 = vrcp.pop %v138
    %v140 = vmul.f32 1.0, %v139
    %141 = vst [vmem:[#allocation7] sm:$0xff] %v140
    // Predicated region
    $region22: #{tpu_custom_call.1} parent=1 // pred_check
      _
    $region23: #{tpu_custom_call.1} parent=1 // pred_check_branch
      %143 = sbr.rel (0) target = $region25
    $region24: #{tpu_custom_call.1} parent=1 // pred_region
      %s145 = ssub.s32 128, 128
      %146 = vsyncadd [#allocation4], %s145
      %s148 = sshll.u32 [#allocation7], 4
      %s149 = int_to_ptr.vmem [resolvable:$true] %s148
      %151 = dma.vmem_to_hbm [thread:$0]  %s149, 128, %s3, [#allocation4]
    $region25: #{tpu_custom_call.1} parent=1 // pred_fallthru
      _
    // Predicated region
    $region26: #{tpu_custom_call.1} parent=1 // pred_check
      _
    $region27: #{tpu_custom_call.1} parent=1 // pred_check_branch
      %153 = sbr.rel (0) target = $region29
    $region28: #{tpu_custom_call.1} parent=1 // pred_region
      %154 = dma.done [#allocation4], 128
    $region29: #{tpu_custom_call.1} parent=1 // pred_fallthru
      _
    %155 = vsyncpa [#allocation3], 1
    %156 = vsyncpa [#allocation6], 1
    %157 = vsyncpa [#allocation4], 1

</llo_original>
